<compile_context>
chip_gen: v5e
topology: v5e:2x2
jax: 0.10.0
libtpu: 0.0.40
codegen_flags: <defaults>
</compile_context>

<pallas_src>
import functools

import jax
import jax.numpy as jnp
from jax.experimental import pallas as pl
from jax.experimental.pallas import tpu as pltpu


def _sdpa_kernel(q_ref, k_ref, v_ref, out_ref, attn_ref, *, inv_temper):
    # Block shapes: q (Bt, tq, D), k (Bt, Lk, D), v (Bt, Lk, Dv).
    # Keep operands in their native dtype (bf16 MXU fast path); accumulate in f32.
    q = q_ref[...] * jnp.asarray(inv_temper, dtype=q_ref.dtype)  # pre-scale q (tq*D), not scores (tq*Lk)
    k = k_ref[...]
    v = v_ref[...]

    # scores = (q / temper) @ k^T — batched dot_general contracting D against D
    # (no explicit transpose of the key tile).
    scores = jnp.einsum("bqd,bkd->bqk", q, k, preferred_element_type=jnp.float32)

    # Numerically-stable softmax over the key axis.
    m = jnp.max(scores, axis=-1, keepdims=True)
    e = jnp.exp(scores - m)
    denom = jnp.sum(e, axis=-1, keepdims=True)       # (Bt, tq, 1) — tiny
    inv = pl.reciprocal(denom, approx=True)          # EUP slot (otherwise idle here)
    inv = inv * (2.0 - denom * inv)                  # one Newton step on the tiny column -> ~f32 accuracy
    attn = e * inv                                   # broadcast multiply on VPU; no divide over tq*Lk

    attn_ref[...] = attn.astype(attn_ref.dtype)      # attention in input dtype

    # output = attention @ v; cast attn to v's dtype so the MXU stays on the
    # bf16 fast path when inputs are bf16.
    out_ref[...] = jnp.einsum(
        "bqk,bkd->bqd", attn.astype(v.dtype), v, preferred_element_type=jnp.float32
    ).astype(out_ref.dtype)


def _choose_tiles(B, Lq):
    """Pick (Bt, tq): fold batches until the matmul M dim (Bt*tq) reaches ~256 rows."""
    if Lq <= 512:
        tq = Lq
    else:
        tq = Lq  # fallback: whole Lq per step (keeps block = full dim, always legal)
        for cand in (512, 256, 128):
            if Lq % cand == 0:
                tq = cand
                break
    Bt = 1
    while Bt < B and B % (Bt * 2) == 0 and Bt * tq < 256:
        Bt *= 2
    return Bt, tq


def _vmem_limit_bytes(Bt, tq, Lk, D, Dv, in_dtype, out_dtype):
    isz = jnp.dtype(in_dtype).itemsize
    osz = jnp.dtype(out_dtype).itemsize
    block = (Bt * tq * D + Bt * Lk * D + Bt * Lk * Dv) * isz \
            + (Bt * tq * Dv + Bt * tq * Lk) * osz
    # double-buffered pipeline blocks + f32 intermediates (scores / exp) + headroom
    need = 2 * block + 2 * (Bt * tq * Lk * 4) + (8 << 20)
    # keep within v7x's 64 MiB physical VMEM
    return int(min(max(need, 32 << 20), 64 << 20))


def scaled_dot_product_attention(q, k, v, dim_model):
    """Pallas wrapper. q:(B,Lq,D) k:(B,Lk,D) v:(B,Lk,Dv) -> (output, attention)."""
    B, Lq, D = q.shape
    Bk, Lk, Dk = k.shape
    Bv, Lv, Dv = v.shape
    assert Bk == B and Bv == B and Dk == D and Lv == Lk

    inv_temper = 1.0 / (float(dim_model) ** 0.5)
    Bt, tq = _choose_tiles(B, Lq)

    kernel = functools.partial(_sdpa_kernel, inv_temper=inv_temper)

    out_shapes = (
        jax.ShapeDtypeStruct((B, Lq, Dv), q.dtype),   # output
        jax.ShapeDtypeStruct((B, Lq, Lk), q.dtype),   # attention, in input dtype
    )

    grid = (B // Bt, pl.cdiv(Lq, tq))

    grid_spec = pltpu.PrefetchScalarGridSpec(
        num_scalar_prefetch=0,
        grid=grid,
        in_specs=[
            pl.BlockSpec((Bt, tq, D), lambda b, i: (b, i, 0)),
            pl.BlockSpec((Bt, Lk, D), lambda b, i: (b, 0, 0)),
            pl.BlockSpec((Bt, Lk, Dv), lambda b, i: (b, 0, 0)),
        ],
        out_specs=[
            pl.BlockSpec((Bt, tq, Dv), lambda b, i: (b, i, 0)),
            pl.BlockSpec((Bt, tq, Lk), lambda b, i: (b, i, 0)),
        ],
    )

    return pl.pallas_call(
        kernel,
        out_shape=out_shapes,
        grid_spec=grid_spec,
        compiler_params=pltpu.CompilerParams(
            dimension_semantics=("parallel", "parallel"),
            vmem_limit_bytes=_vmem_limit_bytes(Bt, tq, Lk, D, Dv, q.dtype, q.dtype),
        ),
    )(q, k, v)


def _reference(q, k, v, dim_model):
    temper = float(dim_model) ** 0.5
    scores = jnp.einsum("bqd,bkd->bqk", q, k) / temper
    attn = jax.nn.softmax(scores, axis=-1)
    out = jnp.einsum("bqk,bkd->bqd", attn, v)
    return out, attn


if __name__ == "__main__":
    key = jax.random.PRNGKey(0)
    kq, kk, kv = jax.random.split(key, 3)

    B, Lq, Lk, D = 2, 8, 8, 32     # dim_model = 32
    dim_model = D

    q = jax.random.normal(kq, (B, Lq, D), dtype=jnp.float32)
    k = jax.random.normal(kk, (B, Lk, D), dtype=jnp.float32)
    v = jax.random.normal(kv, (B, Lk, D), dtype=jnp.float32)

    out, attn = scaled_dot_product_attention(q, k, v, dim_model)
    jax.block_until_ready((out, attn))

    out_ref, attn_ref = _reference(q, k, v, dim_model)
    assert jnp.allclose(out, out_ref, atol=1e-5, rtol=1e-5), "output mismatch"
    assert jnp.allclose(attn, attn_ref, atol=1e-5, rtol=1e-5), "attention mismatch"

    print("KERNEL_OK")
</pallas_src>

<mosaic_0001>
module attributes {stable_mosaic.version = 11 : i64} {
  func.func @_sdpa_kernel(%arg0: i32, %arg1: i32, %arg2: memref<2x8x32xf32, #tpu.memory_space<vmem>>, %arg3: memref<2x8x32xf32, #tpu.memory_space<vmem>>, %arg4: memref<2x8x32xf32, #tpu.memory_space<vmem>>, %arg5: memref<2x8x32xf32, #tpu.memory_space<vmem>>, %arg6: memref<2x8x8xf32, #tpu.memory_space<vmem>>) attributes {dimension_semantics = [#tpu.dimension_semantics<parallel>, #tpu.dimension_semantics<parallel>], iteration_bounds = array<i64: 1, 1>, scalar_prefetch = 0 : i64, scratch_operands = 0 : i64, tpu.core_type = #tpu.core_type<tc>, window_params = [{transform_indices = @transform_0, window_bounds = array<i64: 2, 8, 32>}, {transform_indices = @transform_1, window_bounds = array<i64: 2, 8, 32>}, {transform_indices = @transform_2, window_bounds = array<i64: 2, 8, 32>}, {transform_indices = @transform_3, window_bounds = array<i64: 2, 8, 32>}, {transform_indices = @transform_4, window_bounds = array<i64: 2, 8, 8>}]} {
    %c0 = arith.constant 0 : index
    %c0_0 = arith.constant 0 : index
    %c0_1 = arith.constant 0 : index
    %0 = vector.load %arg2[%c0, %c0_0, %c0_1] : memref<2x8x32xf32, #tpu.memory_space<vmem>>, vector<2x8x32xf32>
    %cst = arith.constant 0.176776692 : f32
    %1 = vector.broadcast %cst : f32 to vector<2x8x32xf32>
    %2 = arith.mulf %0, %1 : vector<2x8x32xf32>
    %c0_2 = arith.constant 0 : index
    %c0_3 = arith.constant 0 : index
    %c0_4 = arith.constant 0 : index
    %3 = vector.load %arg3[%c0_2, %c0_3, %c0_4] : memref<2x8x32xf32, #tpu.memory_space<vmem>>, vector<2x8x32xf32>
    %c0_5 = arith.constant 0 : index
    %c0_6 = arith.constant 0 : index
    %c0_7 = arith.constant 0 : index
    %4 = vector.load %arg4[%c0_5, %c0_6, %c0_7] : memref<2x8x32xf32, #tpu.memory_space<vmem>>, vector<2x8x32xf32>
    "tpu.trace_start"() <{level = 10 : i32, message = "bqd,bkd->bqk"}> : () -> ()
    %cst_8 = arith.constant dense<0.000000e+00> : vector<2x8x8xf32>
    %5 = tpu.matmul %2, %3, %cst_8 {dimension_numbers = #tpu.dot_dimension_numbers<[2], [2], [1], [1], [0, 0, 0, 1, 1, 1], [0], [0]>} : vector<2x8x32xf32>, vector<2x8x32xf32>, vector<2x8x8xf32> -> vector<2x8x8xf32>
    "tpu.trace_stop"() : () -> ()
    %cst_9 = arith.constant dense<0xFF800000> : vector<2x8xf32>
    %6 = vector.multi_reduction <maximumf>, %5, %cst_9 [2] : vector<2x8x8xf32> to vector<2x8xf32>
    %7 = vector.shape_cast %6 : vector<2x8xf32> to vector<2x8x1xf32>
    %8 = vector.broadcast %7 : vector<2x8x1xf32> to vector<2x8x8xf32>
    %9 = arith.subf %5, %8 : vector<2x8x8xf32>
    %10 = math.exp %9 : vector<2x8x8xf32>
    %cst_10 = arith.constant dense<0.000000e+00> : vector<2x8xf32>
    %11 = vector.multi_reduction <add>, %10, %cst_10 [2] : vector<2x8x8xf32> to vector<2x8xf32>
    %12 = vector.shape_cast %11 : vector<2x8xf32> to vector<2x8x1xf32>
    %13 = tpu.reciprocal %12 {approx = true} : vector<2x8x1xf32> -> vector<2x8x1xf32>
    %14 = arith.mulf %12, %13 : vector<2x8x1xf32>
    %cst_11 = arith.constant 2.000000e+00 : f32
    %15 = vector.broadcast %cst_11 : f32 to vector<2x8x1xf32>
    %16 = arith.subf %15, %14 : vector<2x8x1xf32>
    %17 = arith.mulf %13, %16 : vector<2x8x1xf32>
    %18 = vector.broadcast %17 : vector<2x8x1xf32> to vector<2x8x8xf32>
    %19 = arith.mulf %10, %18 : vector<2x8x8xf32>
    %c0_12 = arith.constant 0 : index
    %c0_13 = arith.constant 0 : index
    %c0_14 = arith.constant 0 : index
    %20 = vector.load %arg6[%c0_12, %c0_13, %c0_14] : memref<2x8x8xf32, #tpu.memory_space<vmem>>, vector<2x8x8xf32>
    tpu.vector_store %arg6[%c0_12, %c0_13, %c0_14], %19 {strides = array<i32>} : memref<2x8x8xf32, #tpu.memory_space<vmem>>, vector<2x8x8xf32>,
    "tpu.trace_start"() <{level = 10 : i32, message = "bqk,bkd->bqd"}> : () -> ()
    %cst_15 = arith.constant dense<0.000000e+00> : vector<2x8x32xf32>
    %21 = tpu.matmul %19, %4, %cst_15 {dimension_numbers = #tpu.dot_dimension_numbers<[2], [1], [1], [2], [0, 0, 0, 1, 1, 2], [0], [0]>} : vector<2x8x8xf32>, vector<2x8x32xf32>, vector<2x8x32xf32> -> vector<2x8x32xf32>
    "tpu.trace_stop"() : () -> ()
    %c0_16 = arith.constant 0 : index
    %c0_17 = arith.constant 0 : index
    %c0_18 = arith.constant 0 : index
    %22 = vector.load %arg5[%c0_16, %c0_17, %c0_18] : memref<2x8x32xf32, #tpu.memory_space<vmem>>, vector<2x8x32xf32>
    tpu.vector_store %arg5[%c0_16, %c0_17, %c0_18], %21 {strides = array<i32>} : memref<2x8x32xf32, #tpu.memory_space<vmem>>, vector<2x8x32xf32>,
    return
  }
  func.func @transform_0(%arg0: i32, %arg1: i32) -> (i32, i32, i32) {
    %c0_i32 = arith.constant 0 : i32
    %c0_i32_0 = arith.constant 0 : i32
    return %arg0, %arg1, %c0_i32 : i32, i32, i32
  }
  func.func @transform_1(%arg0: i32, %arg1: i32) -> (i32, i32, i32) {
    %c0_i32 = arith.constant 0 : i32
    %c0_i32_0 = arith.constant 0 : i32
    %c0_i32_1 = arith.constant 0 : i32
    return %arg0, %c0_i32, %c0_i32_0 : i32, i32, i32
  }
  func.func @transform_2(%arg0: i32, %arg1: i32) -> (i32, i32, i32) {
    %c0_i32 = arith.constant 0 : i32
    %c0_i32_0 = arith.constant 0 : i32
    %c0_i32_1 = arith.constant 0 : i32
    return %arg0, %c0_i32, %c0_i32_0 : i32, i32, i32
  }
  func.func @transform_3(%arg0: i32, %arg1: i32) -> (i32, i32, i32) {
    %c0_i32 = arith.constant 0 : i32
    %c0_i32_0 = arith.constant 0 : i32
    return %arg0, %arg1, %c0_i32 : i32, i32, i32
  }
  func.func @transform_4(%arg0: i32, %arg1: i32) -> (i32, i32, i32) {
    %c0_i32 = arith.constant 0 : i32
    %c0_i32_0 = arith.constant 0 : i32
    return %arg0, %arg1, %c0_i32 : i32, i32, i32
  }
}

</mosaic_0001>

<llo_original>
// kernel: tpu_custom_call.1
$region0: #{tpu_custom_call.1}
  #allocation0 [shape = 'u32[]', space=smem, size = 0x4, offset = 0x4, fixed_abs, tag = 'smem constant byte address 0x4 - core index']
  #allocation1 [shape = 'u32[72,128]{1,0:T(1,128)}', space=vmem, size = 0x9000, scoped, tag = 'internal scratch']
  %s0 = inlined_call_operand.hbm [shape: f32[2,8,32], index: 0, kind: input, shape index: {}]
  %s1 = inlined_call_operand.hbm [shape: f32[2,8,32], index: 1, kind: input, shape index: {}]
  %s2 = inlined_call_operand.hbm [shape: f32[2,8,32], index: 2, kind: input, shape index: {}]
  %s3 = inlined_call_operand.hbm [shape: f32[2,8,32], index: 3, kind: output, shape index: {0}]
  %s4 = inlined_call_operand.hbm [shape: f32[2,8,8], index: 4, kind: output, shape index: {1}]
  %5 = xla_tuple %s3, %s4
  %s6 = sld [smem:[#allocation0]]
  $region42: #{tpu_custom_call.1} parent=0
    _
  %s8 = ssub.s32 1, %s6
  %s9 = scalar_select 0, %s8, %s6
  $region1: #{tpu_custom_call.1} parent=0
    #allocation2 [shape = 'u8[8192]{0}', space=vmem, size = 0x2000, scoped, tag = 'input window, operand 0, single buffered']
    #allocation3 [shape = 's32[1]{0}', space=sflag, size = 0x4, scoped, tag = 'scoped memory for tpu_custom_call.1']
    #allocation4 [shape = 's32[1]{0}', space=sflag, size = 0x4, scoped, tag = 'scoped memory for tpu_custom_call.1']
    #allocation5 [shape = 'u8[8192]{0}', space=vmem, size = 0x2000, scoped, tag = 'input window, operand 1, single buffered']
    #allocation6 [shape = 's32[1]{0}', space=sflag, size = 0x4, scoped, tag = 'scoped memory for tpu_custom_call.1']
    #allocation7 [shape = 'u8[8192]{0}', space=vmem, size = 0x2000, scoped, tag = 'input window, operand 2, single buffered']
    #allocation8 [shape = 'u8[8192]{0}', space=vmem, size = 0x2000, scoped, tag = 'output window, operand 0, single buffered']
    #allocation9 [shape = 'u8[8192]{0}', space=vmem, size = 0x2000, scoped, tag = 'output window, operand 1, single buffered']
    #allocation10 [shape = 's32[1]{0}', space=sflag, size = 0x4, scoped, tag = 'scoped memory for tpu_custom_call.1']
    %10 = vsyncpa [#allocation3], 0
    %11 = vsyncpa [#allocation6], 0
    %12 = vsyncpa [#allocation4], 0
    %13 = vsyncpa [#allocation10], 0
    // Predicated region
    $region2: #{tpu_custom_call.1} parent=1 // pred_check
      _
    $region3: #{tpu_custom_call.1} parent=1 // pred_check_branch
      %15 = sbr.rel (0) target = $region5
    $region4: #{tpu_custom_call.1} parent=1 // pred_region
      %17 = vsyncadd [#allocation3], 0
      %s18 = sshll.u32 %s0, 4
      %s19 = int_to_ptr.hbm [resolvable:$true] %s18
      %s20 = sshll.u32 [#allocation2], 4
      %s21 = int_to_ptr.vmem [resolvable:$true] %s20
      %26 = dma.hbm_to_vmem [thread:$0]  %s19, 256, %s21, [#allocation3], 128, 128, 8
    $region5: #{tpu_custom_call.1} parent=1 // pred_fallthru
      _
    // Predicated region
    $region6: #{tpu_custom_call.1} parent=1 // pred_check
      _
    $region7: #{tpu_custom_call.1} parent=1 // pred_check_branch
      %28 = sbr.rel (0) target = $region9
    $region8: #{tpu_custom_call.1} parent=1 // pred_region
      %30 = vsyncadd [#allocation6], 0
      %s31 = sshll.u32 %s1, 4
      %s32 = int_to_ptr.hbm [resolvable:$true] %s31
      %s33 = sshll.u32 [#allocation5], 4
      %s34 = int_to_ptr.vmem [resolvable:$true] %s33
      %39 = dma.hbm_to_vmem [thread:$0]  %s32, 256, %s34, [#allocation6], 128, 128, 8
    $region9: #{tpu_custom_call.1} parent=1 // pred_fallthru
      _
    // Predicated region
    $region10: #{tpu_custom_call.1} parent=1 // pred_check
      _
    $region11: #{tpu_custom_call.1} parent=1 // pred_check_branch
      %41 = sbr.rel (0) target = $region13
    $region12: #{tpu_custom_call.1} parent=1 // pred_region
      %43 = vsyncadd [#allocation6], 0
      %s44 = sshll.u32 %s2, 4
      %s45 = int_to_ptr.hbm [resolvable:$true] %s44
      %s46 = sshll.u32 [#allocation7], 4
      %s47 = int_to_ptr.vmem [resolvable:$true] %s46
      %52 = dma.hbm_to_vmem [thread:$0]  %s45, 256, %s47, [#allocation6], 128, 128, 8
    $region13: #{tpu_custom_call.1} parent=1 // pred_fallthru
      _
    // Predicated region
    $region14: #{tpu_custom_call.1} parent=1 // pred_check
      _
    $region15: #{tpu_custom_call.1} parent=1 // pred_check_branch
      %54 = sbr.rel (0) target = $region17
    $region16: #{tpu_custom_call.1} parent=1 // pred_region
      %56 = dma.done [#allocation3], 256
    $region17: #{tpu_custom_call.1} parent=1 // pred_fallthru
      _
    // Predicated region
    $region18: #{tpu_custom_call.1} parent=1 // pred_check
      _
    $region19: #{tpu_custom_call.1} parent=1 // pred_check_branch
      %58 = sbr.rel (0) target = $region21
    $region20: #{tpu_custom_call.1} parent=1 // pred_region
      %60 = dma.done [#allocation6], 256
    $region21: #{tpu_custom_call.1} parent=1 // pred_fallthru
      _
    // Predicated region
    $region22: #{tpu_custom_call.1} parent=1 // pred_check
      _
    $region23: #{tpu_custom_call.1} parent=1 // pred_check_branch
      %62 = sbr.rel (0) target = $region25
    $region24: #{tpu_custom_call.1} parent=1 // pred_region
      %64 = dma.done [#allocation6], 256
    $region25: #{tpu_custom_call.1} parent=1 // pred_fallthru
      _
    %v65 = vld [vmem:[#allocation2] sm:$0xff]
    %v66 = vld [vmem:[#allocation2 + $0x8] sm:$0xff]
    %v67 = vmul.f32 %v65, 0.17677669
    %v68 = vmul.f32 %v66, 0.17677669
    %v69 = vld [vmem:[#allocation5] sm:$0xff]
    %v70 = vld [vmem:[#allocation5 + $0x8] sm:$0xff]
    %v71 = vld [vmem:[#allocation7] sm:$0xff]
    %v72 = vld [vmem:[#allocation7 + $0x8] sm:$0xff]
    %vm73 = vcmask 261120
    %v75 = vsel %vm73, %v67, 0
    %v78 = vsel %vm73, %v69, 0
    %80 = vmatpush.xpose.msra.mxu0 0.0
    %81 = vmatpush.xpose.msra.mxu0 0.0
    %82 = vmatpush.xpose.msra.mxu0 0.0
    %83 = vmatpush.xpose.msra.mxu0 0.0
    %84 = vmatpush.xpose.msra.mxu0 0.0
    %85 = vmatpush.xpose.msra.mxu0 0.0
    %86 = vmatpush.xpose.msra.mxu0 0.0
    %87 = vmatpush.xpose.msra.mxu0 0.0
    %88 = vmatpush.xpose.msra.mxu0 0.0
    %89 = vmatpush.xpose.msra.mxu0 0.0
    %90 = vmatpush.xpose.msra.mxu0 0.0
    %91 = vmatpush.xpose.msra.mxu0 0.0
    %92 = vmatpush.xpose.msra.mxu0 0.0
    %93 = vmatpush.xpose.msra.mxu0 0.0
    %94 = vmatpush.xpose.msra.mxu0 0.0
    %95 = vmatpush.xpose.msra.mxu0 %v78
    %96 = vmatmul.f32.gmra.mxu0 %v75
    %v97 = vpop.f32.mrf.mxu0
    %v98 = vadd.f32 0.0, %v97
    %99 = vdwg.mxu0
    %v101 = vsel %vm73, %v68, 0
    %v104 = vsel %vm73, %v70, 0
    %106 = vmatpush.xpose.msra.mxu0 0.0
    %107 = vmatpush.xpose.msra.mxu0 0.0
    %108 = vmatpush.xpose.msra.mxu0 0.0
    %109 = vmatpush.xpose.msra.mxu0 0.0
    %110 = vmatpush.xpose.msra.mxu0 0.0
    %111 = vmatpush.xpose.msra.mxu0 0.0
    %112 = vmatpush.xpose.msra.mxu0 0.0
    %113 = vmatpush.xpose.msra.mxu0 0.0
    %114 = vmatpush.xpose.msra.mxu0 0.0
    %115 = vmatpush.xpose.msra.mxu0 0.0
    %116 = vmatpush.xpose.msra.mxu0 0.0
    %117 = vmatpush.xpose.msra.mxu0 0.0
    %118 = vmatpush.xpose.msra.mxu0 0.0
    %119 = vmatpush.xpose.msra.mxu0 0.0
    %120 = vmatpush.xpose.msra.mxu0 0.0
    %121 = vmatpush.xpose.msra.mxu0 %v104
    %122 = vmatmul.f32.gmra.mxu0 %v101
    %v123 = vpop.f32.mrf.mxu0
    %v124 = vadd.f32 0.0, %v123
    %125 = vdwg.mxu0
    %vm126 = vcmask 64512
    %v127 = vsel %vm126, %v98, -inf
    %128 = vmax.xlane.f32.xlu0 %v127
    %v129 = vpop.xlane.xlu0 %128
    %v130 = vsel %vm126, %v124, -inf
    %131 = vmax.xlane.f32.xlu0 %v130
    %v132 = vpop.xlane.xlu0 %131
    %v133 = vsub.f32 %v98, %v129
    %v134 = vsub.f32 %v124, %v132
    %v135 = vmul.f32 %v133, 1.442695
    %v136 = vpow.pop %v135
    %v137 = vmul.f32 %v134, 1.442695
    %v138 = vpow.pop %v137
    %v139 = vsel %vm126, %v136, 0.0
    %140 = vadd.xlane.f32.xlu0 %v139
    %v141 = vpop.xlane.xlu0 %140
    %v142 = vsel %vm126, %v138, 0.0
    %143 = vadd.xlane.f32.xlu0 %v142
    %v144 = vpop.xlane.xlu0 %143
    %v145 = vrcp.pop %v141
    %v146 = vrcp.pop %v144
    %v147 = vmul.f32 %v141, %v145
    %v148 = vmul.f32 %v144, %v146
    %v149 = vsub.f32 2.0, %v147
    %v150 = vsub.f32 2.0, %v148
    %v151 = vmul.f32 %v145, %v149
    %v152 = vmul.f32 %v146, %v150
    %v153 = vmul.f32 %v136, %v151
    %v154 = vmul.f32 %v138, %v152
    %155 = vst.msk [vmem:[#allocation9] sm:$0xff] %vm126, %v153
    %156 = vst.msk [vmem:[#allocation9 + $0x8] sm:$0xff] %vm126, %v154
    %v158 = vsel %vm126, %v153, 0
    %160 = vmatpush.msra.mxu0 0.0
    %161 = vmatpush.msra.mxu0 0.0
    %162 = vmatpush.msra.mxu0 0.0
    %163 = vmatpush.msra.mxu0 0.0
    %164 = vmatpush.msra.mxu0 0.0
    %165 = vmatpush.msra.mxu0 0.0
    %166 = vmatpush.msra.mxu0 0.0
    %167 = vmatpush.msra.mxu0 0.0
    %168 = vmatpush.msra.mxu0 0.0
    %169 = vmatpush.msra.mxu0 0.0
    %170 = vmatpush.msra.mxu0 0.0
    %171 = vmatpush.msra.mxu0 0.0
    %172 = vmatpush.msra.mxu0 0.0
    %173 = vmatpush.msra.mxu0 0.0
    %174 = vmatpush.msra.mxu0 0.0
    %175 = vmatpush.msra.mxu0 %v71
    %176 = vmatmul.f32.gmra.mxu0 %v158
    %v177 = vpop.f32.mrf.mxu0
    %v178 = vadd.f32 0.0, %v177
    %179 = vdwg.mxu0
    %v181 = vsel %vm126, %v154, 0
    %183 = vmatpush.msra.mxu0 0.0
    %184 = vmatpush.msra.mxu0 0.0
    %185 = vmatpush.msra.mxu0 0.0
    %186 = vmatpush.msra.mxu0 0.0
    %187 = vmatpush.msra.mxu0 0.0
    %188 = vmatpush.msra.mxu0 0.0
    %189 = vmatpush.msra.mxu0 0.0
    %190 = vmatpush.msra.mxu0 0.0
    %191 = vmatpush.msra.mxu0 0.0
    %192 = vmatpush.msra.mxu0 0.0
    %193 = vmatpush.msra.mxu0 0.0
    %194 = vmatpush.msra.mxu0 0.0
    %195 = vmatpush.msra.mxu0 0.0
    %196 = vmatpush.msra.mxu0 0.0
    %197 = vmatpush.msra.mxu0 0.0
    %198 = vmatpush.msra.mxu0 %v72
    %199 = vmatmul.f32.gmra.mxu0 %v181
    %v200 = vpop.f32.mrf.mxu0
    %v201 = vadd.f32 0.0, %v200
    %202 = vdwg.mxu0
    %203 = vst.msk [vmem:[#allocation8] sm:$0xff] %vm73, %v178
    %204 = vst.msk [vmem:[#allocation8 + $0x8] sm:$0xff] %vm73, %v201
    // Predicated region
    $region26: #{tpu_custom_call.1} parent=1 // pred_check
      _
    $region27: #{tpu_custom_call.1} parent=1 // pred_check_branch
      %206 = sbr.rel (0) target = $region29
    $region28: #{tpu_custom_call.1} parent=1 // pred_region
      %208 = vsyncadd [#allocation4], 0
      %s209 = sshll.u32 [#allocation8], 4
      %s210 = int_to_ptr.vmem [resolvable:$true] %s209
      %s211 = sshll.u32 %s3, 4
      %s212 = int_to_ptr.hbm [resolvable:$true] %s211
      %217 = dma.vmem_to_hbm [thread:$0]  %s210, 256, %s212, [#allocation4], 128, 128, 8
    $region29: #{tpu_custom_call.1} parent=1 // pred_fallthru
      _
    // Predicated region
    $region30: #{tpu_custom_call.1} parent=1 // pred_check
      _
    $region31: #{tpu_custom_call.1} parent=1 // pred_check_branch
      %219 = sbr.rel (0) target = $region33
    $region32: #{tpu_custom_call.1} parent=1 // pred_region
      %221 = vsyncadd [#allocation10], 0
      %s222 = sshll.u32 [#allocation9], 4
      %s223 = int_to_ptr.vmem [resolvable:$true] %s222
      %s224 = sshll.u32 %s4, 4
      %s225 = int_to_ptr.hbm [resolvable:$true] %s224
      %230 = dma.vmem_to_hbm [thread:$0]  %s223, 256, %s225, [#allocation10], 128, 128, 8
    $region33: #{tpu_custom_call.1} parent=1 // pred_fallthru
      _
    // Predicated region
    $region34: #{tpu_custom_call.1} parent=1 // pred_check
      _
    $region35: #{tpu_custom_call.1} parent=1 // pred_check_branch
      %232 = sbr.rel (0) target = $region37
    $region36: #{tpu_custom_call.1} parent=1 // pred_region
      %234 = dma.done [#allocation4], 256
    $region37: #{tpu_custom_call.1} parent=1 // pred_fallthru
      _
    // Predicated region
    $region38: #{tpu_custom_call.1} parent=1 // pred_check
      _
    $region39: #{tpu_custom_call.1} parent=1 // pred_check_branch
      %236 = sbr.rel (0) target = $region41
    $region40: #{tpu_custom_call.1} parent=1 // pred_region
      %238 = dma.done [#allocation10], 256
    $region41: #{tpu_custom_call.1} parent=1 // pred_fallthru
      _
    %239 = vsyncpa [#allocation3], 1
    %240 = vsyncpa [#allocation6], 1
    %241 = vsyncpa [#allocation4], 1
    %242 = vsyncpa [#allocation10], 1

</llo_original>
